<compile_context>
chip_gen: v6e
topology: v6e:2x2x1
jax: 0.10.0
libtpu: 0.0.40
codegen_flags: <defaults>
</compile_context>

<pallas_src>
import functools

import jax
import jax.numpy as jnp
from jax.experimental import pallas as pl
from jax.experimental.pallas import tpu as pltpu

LANE = 128            # every feature dim is zero-padded to the lane width
SUBLANE = 8           # batch rows are padded to a multiple of this
BIAS_LANE = LANE - 1  # activation lane held at 1.0; bias lives in weight row
                      # BIAS_LANE so the matmul produces x@W.T + b directly
PAD_LOGVAR = -1e9     # exp(0.5*PAD_LOGVAR) underflows to exactly 0.0, so
                      # sampled pad weights are exactly 0 regardless of eps


# ------------------------------ Pallas kernel ------------------------------ #

def _stack_kernel(x_ref, w_ref, o_ref, cache_ref, *, plan, tb):
    """One grid step = one stochastic layer applied to one batch block.

    grid = (num_batch_blocks, num_layers); layer axis is the inner sequential
    ("arbitrary") axis, batch axis is "parallel".

    x_ref    : (tb, LANE)   f32  padded network input (same block all layers)
    w_ref    : (LANE, LANE) bf16 this layer's sampled [in, out] weights with
                                 the bias folded into row BIAS_LANE
    o_ref    : (tb, LANE)   f32  resident activation / final output block
                                 (same block index across the layer axis)
    cache_ref: (n_cache, tb, LANE) f32 scratch holding the pre-concat input of
                                 every layer that feeds a skip connection
    """
    s = pl.program_id(1)
    lane = jax.lax.broadcasted_iota(jnp.int32, (tb, LANE), 1)

    for step, st in enumerate(plan):
        @pl.when(s == step)
        def _(st=st, step=step):
            # Previous layer's activation lives in the revisited output block.
            x = x_ref[...] if step == 0 else o_ref[...]

            # 1) Cache this layer's pre-concat input if a later layer needs
            #    one of its columns (skip-connection source).
            if st["cache_slot"] is not None:
                cache_ref[st["cache_slot"]] = x

            # 2) "Concat" cached skip columns: XLU lane rotate + lane select
            #    into the fixed target lane (lane-padded layout).
            for k, (slot, idx) in enumerate(st["needed"]):
                pos = st["concat_base"] + k
                src = cache_ref[slot]
                shift = (pos - idx) % LANE
                if shift:
                    src = pltpu.roll(src, shift=shift, axis=1)
                x = jnp.where(lane == pos, src, x)

            # 3) Constant-1 lane feeds the bias row of W (bias folded in).
            x = jnp.where(lane == BIAS_LANE, 1.0, x)

            # 4) Lane-dense bf16 MXU matmul, f32 accumulation (bias included).
            y = jnp.dot(x.astype(jnp.bfloat16), w_ref[...],
                        preferred_element_type=jnp.float32)

            # 5) tanh for every layer except layer 0.
            if st["apply_act"]:
                y = jnp.tanh(y)

            o_ref[...] = y


# ------------------------------ host helpers ------------------------------- #

def _round_up(x, m):
    return ((x + m - 1) // m) * m


def build_plan(layers_cfg, layer_dims):
    """Static per-layer execution metadata, highest layer index -> 0."""
    order = sorted(layers_cfg.keys(), reverse=True)
    slot_of_layer = {}
    plan = []
    for i in order:
        cfg = layers_cfg[i]
        n_in, n_out = layer_dims[i]
        assert n_in < BIAS_LANE and n_out <= LANE, "layer too wide for one tile"
        cache_slot = None
        if cfg["indices_of_nodes_to_cache"]:
            cache_slot = len(slot_of_layer)
            slot_of_layer[i] = cache_slot
        needed = tuple((slot_of_layer[src_layer], src_idx)
                       for (src_layer, src_idx) in cfg["indices_of_needed_nodes"])
        plan.append(dict(
            layer_idx=i,
            cache_slot=cache_slot,
            needed=needed,
            concat_base=n_in - len(needed),   # lanes where cached columns land
            apply_act=(i > 0),
            n_in=n_in,
            n_out=n_out,
        ))
    return tuple(plan)


def pack_variational_params(params, plan):
    """ONE-TIME packing at network construction (NOT per forward).

    Transpose mean/logvar to [in, out], fold the bias into weight row
    BIAS_LANE, zero-pad to (LANE, LANE) (pad logvar = PAD_LOGVAR so sampled
    pad weights are exactly zero), stack in execution order.
    """
    wm_list, wlv_list = [], []
    for st in plan:
        p = params[st["layer_idx"]]
        n_in, n_out = st["n_in"], st["n_out"]
        wm = jnp.zeros((LANE, LANE), jnp.float32)
        wlv = jnp.full((LANE, LANE), PAD_LOGVAR, jnp.float32)
        wm = wm.at[:n_in, :n_out].set(p["w_mean"].T)
        wm = wm.at[BIAS_LANE, :n_out].set(p["b_mean"])
        wlv = wlv.at[:n_in, :n_out].set(p["w_logvar"].T)
        wlv = wlv.at[BIAS_LANE, :n_out].set(p["b_logvar"])
        wm_list.append(wm)
        wlv_list.append(wlv)
    return jnp.stack(wm_list), jnp.stack(wlv_list)   # (L,LANE,LANE) x2


def sample_weights(w_mean_pad, w_logvar_pad, key):
    """Per-forward reparameterization over the padded stacks: ONE fused
    elementwise op producing the bf16 weight stack the kernel streams."""
    eps = jax.random.normal(key, w_mean_pad.shape, jnp.float32)
    w = w_mean_pad + eps * jnp.exp(0.5 * w_logvar_pad)
    return w.astype(jnp.bfloat16)


def forward(x, w_mean_pad, w_logvar_pad, key, *, plan, n_input, n_output,
            batch_block=128):
    """Mirror ComplexStochasticNetworkJupyneat.forward with ONE pallas_call."""
    num_layers = len(plan)
    w_all = sample_weights(w_mean_pad, w_logvar_pad, key)     # (L,128,128) bf16

    batch = x.shape[0]
    tb = min(batch_block, _round_up(batch, SUBLANE))
    batch_pad = _round_up(batch, tb)
    nb = batch_pad // tb
    x_pad = jnp.zeros((batch_pad, LANE), jnp.float32).at[:batch, :n_input].set(
        x.astype(jnp.float32))

    n_cache = max(1, sum(1 for st in plan if st["cache_slot"] is not None))
    kernel = functools.partial(_stack_kernel, plan=plan, tb=tb)
    cost = pl.CostEstimate(
        flops=2 * batch_pad * LANE * LANE * num_layers,
        transcendentals=batch_pad * LANE * max(num_layers - 1, 0),
        bytes_accessed=(4 * x_pad.size + 2 * w_all.size * nb
                        + 4 * batch_pad * LANE),
    )
    out_pad = pl.pallas_call(
        kernel,
        out_shape=jax.ShapeDtypeStruct((batch_pad, LANE), jnp.float32),
        grid=(nb, num_layers),
        in_specs=[
            # Network input: one block per batch block, constant over layers.
            pl.BlockSpec((tb, LANE), lambda b, s: (b, 0)),
            # Weights: one (128,128) bf16 tile per layer, double-buffered.
            pl.BlockSpec((None, LANE, LANE), lambda b, s: (s, 0, 0)),
        ],
        # Output block revisited across the layer axis -> resident activation.
        out_specs=pl.BlockSpec((tb, LANE), lambda b, s: (b, 0)),
        scratch_shapes=[pltpu.VMEM((n_cache, tb, LANE), jnp.float32)],
        compiler_params=pltpu.CompilerParams(
            dimension_semantics=("parallel", "arbitrary")),
        cost_estimate=cost,
    )(x_pad, w_all)

    kl_qw_pw = 0.0   # the reference forward never accumulates KL
    return out_pad[:batch, :n_output], kl_qw_pw


# -------------------------- params / reference ----------------------------- #

def make_network_params(key, layer_dims):
    """Deterministic variational parameters per layer (PyTorch weight layout)."""
    params = {}
    for layer_idx in sorted(layer_dims.keys()):
        n_in, n_out = layer_dims[layer_idx]
        key, k1, k2, k3, k4 = jax.random.split(key, 5)
        params[layer_idx] = dict(
            w_mean=jax.random.normal(k1, (n_out, n_in), jnp.float32) * 0.5,
            w_logvar=jnp.full((n_out, n_in), -4.0, jnp.float32)
                     + 0.1 * jax.random.normal(k2, (n_out, n_in), jnp.float32),
            b_mean=jax.random.normal(k3, (n_out,), jnp.float32) * 0.1,
            b_logvar=jnp.full((n_out,), -4.0, jnp.float32)
                     + 0.1 * jax.random.normal(k4, (n_out,), jnp.float32),
        )
    return params


def reference_forward(x, plan, w_all):
    """Pure-JAX, unpadded mirror of the PyTorch forward, using exactly the
    same sampled bf16 weights the kernel streams (for verification)."""
    cache_x = {}
    h = x.astype(jnp.float32)
    for step, st in enumerate(plan):
        if st["cache_slot"] is not None:
            cache_x[st["cache_slot"]] = h
        chunks = [h] + [cache_x[slot][:, idx:idx + 1] for slot, idx in st["needed"]]
        h = jnp.concatenate(chunks, axis=1) if len(chunks) > 1 else h
        w = w_all[step, :st["n_in"], :st["n_out"]].astype(jnp.float32)   # [in,out]
        b = w_all[step, BIAS_LANE, :st["n_out"]].astype(jnp.float32)
        h = jnp.dot(h.astype(jnp.bfloat16).astype(jnp.float32), w,
                    precision=jax.lax.Precision.HIGHEST) + b
        if st["apply_act"]:
            h = jnp.tanh(h)
    return h


# ---------------------------------- main ----------------------------------- #

if __name__ == "__main__":
    # Synthetic genome-derived topology (what transform_genome_to_layers would
    # produce):
    #   layer 2: 4 inputs -> 6 nodes (tanh); caches its input column 1
    #   layer 1: 6 inputs -> 5 nodes (tanh)
    #   layer 0: 5 + 1 cached (from layer 2, col 1) = 6 inputs -> 3 outputs
    layers_cfg = {
        2: dict(indices_of_nodes_to_cache=[1], indices_of_needed_nodes=[]),
        1: dict(indices_of_nodes_to_cache=[], indices_of_needed_nodes=[]),
        0: dict(indices_of_nodes_to_cache=[], indices_of_needed_nodes=[(2, 1)]),
    }
    layer_dims = {2: (4, 6), 1: (6, 5), 0: (6, 3)}   # (n_input, n_output)
    n_input, n_output = 4, 3
    batch = 256   # fills the MXU M dimension; 2 batch blocks for v7x's 2 TCs

    plan = build_plan(layers_cfg, layer_dims)

    root = jax.random.PRNGKey(0)
    k_params, k_x, k_eps = jax.random.split(root, 3)
    params = make_network_params(k_params, layer_dims)
    # ONE-TIME pre-pad / pre-transpose / bias-fold of the variational params.
    w_mean_pad, w_logvar_pad = pack_variational_params(params, plan)
    x = jax.random.normal(k_x, (batch, n_input), jnp.float32)

    fwd = jax.jit(functools.partial(
        forward, plan=plan, n_input=n_input, n_output=n_output))
    out, kl = fwd(x, w_mean_pad, w_logvar_pad, k_eps)
    out = jax.block_until_ready(out)

    # Verify against a plain-JAX mirror of the PyTorch forward using the same
    # per-forward sampled weights (sampling is deterministic given the key).
    w_all = sample_weights(w_mean_pad, w_logvar_pad, k_eps)
    ref = reference_forward(x, plan, w_all)

    assert out.shape == (batch, n_output), out.shape
    assert float(kl) == 0.0
    assert jnp.allclose(out, ref, atol=5e-2, rtol=1e-2), (out, ref)
    print("KERNEL_OK")
</pallas_src>

<mosaic_0001>
module attributes {stable_mosaic.version = 11 : i64} {
  func.func @_stack_kernel(%arg0: i32, %arg1: i32, %arg2: memref<128x128xf32, #tpu.memory_space<vmem>>, %arg3: memref<1x128x128xbf16, #tpu.memory_space<vmem>>, %arg4: memref<128x128xf32, #tpu.memory_space<vmem>>, %arg5: memref<1x128x128xf32, #tpu.memory_space<vmem>>) attributes {dimension_semantics = [#tpu.dimension_semantics<parallel>, #tpu.dimension_semantics<arbitrary>], iteration_bounds = array<i64: 2, 3>, scalar_prefetch = 0 : i64, scratch_operands = 1 : i64, tpu.core_type = #tpu.core_type<tc>, window_params = [{transform_indices = @transform_0, window_bounds = array<i64: 128, 128>}, {transform_indices = @transform_1, window_bounds = array<i64: 1, 128, 128>}, {transform_indices = @transform_2, window_bounds = array<i64: 128, 128>}]} {
    %0 = tpu.iota {dimensions = array<i32: 1>} : vector<128x128xi32>
    %c0_i32 = arith.constant 0 : i32
    %1 = arith.cmpi eq, %arg1, %c0_i32 : i32
    %2 = arith.extui %1 : i1 to i32
    %c0_i32_0 = arith.constant 0 : i32
    %3 = arith.cmpi ne, %2, %c0_i32_0 : i32
    scf.if %3 {
      %c0 = arith.constant 0 : index
      %c0_3 = arith.constant 0 : index
      %10 = vector.load %arg2[%c0, %c0_3] : memref<128x128xf32, #tpu.memory_space<vmem>>, vector<128x128xf32>
      %c0_4 = arith.constant 0 : index
      %c0_5 = arith.constant 0 : index
      %c0_6 = arith.constant 0 : index
      %11 = vector.load %arg5[%c0_4, %c0_5, %c0_6] : memref<1x128x128xf32, #tpu.memory_space<vmem>>, vector<1x128x128xf32>
      %12 = vector.shape_cast %11 : vector<1x128x128xf32> to vector<128x128xf32>
      %13 = vector.shape_cast %10 : vector<128x128xf32> to vector<1x128x128xf32>
      tpu.vector_store %arg5[%c0_4, %c0_5, %c0_6], %13 {strides = array<i32>} : memref<1x128x128xf32, #tpu.memory_space<vmem>>, vector<1x128x128xf32>,
      %c127_i32 = arith.constant 127 : i32
      %14 = vector.broadcast %c127_i32 : i32 to vector<128x128xi32>
      %15 = arith.cmpi eq, %0, %14 : vector<128x128xi32>
      %cst = arith.constant 1.000000e+00 : f32
      %16 = vector.broadcast %cst : f32 to vector<128x128xf32>
      %17 = arith.select %15, %16, %10 : vector<128x128xi1>, vector<128x128xf32>
      %18 = arith.truncf %17 : vector<128x128xf32> to vector<128x128xbf16>
      %c0_7 = arith.constant 0 : index
      %c0_8 = arith.constant 0 : index
      %c0_9 = arith.constant 0 : index
      %19 = vector.load %arg3[%c0_7, %c0_8, %c0_9] : memref<1x128x128xbf16, #tpu.memory_space<vmem>>, vector<1x128x128xbf16>
      %20 = vector.shape_cast %19 : vector<1x128x128xbf16> to vector<128x128xbf16>
      %cst_10 = arith.constant dense<0.000000e+00> : vector<128x128xf32>
      %21 = tpu.matmul %18, %20, %cst_10 {dimension_numbers = #tpu.dot_dimension_numbers<[1], [0], [0], [1], [0, 0, 1, 1], [], []>} : vector<128x128xbf16>, vector<128x128xbf16>, vector<128x128xf32> -> vector<128x128xf32>
      %22 = math.tanh %21 : vector<128x128xf32>
      %c0_11 = arith.constant 0 : index
      %c0_12 = arith.constant 0 : index
      %23 = vector.load %arg4[%c0_11, %c0_12] : memref<128x128xf32, #tpu.memory_space<vmem>>, vector<128x128xf32>
      tpu.vector_store %arg4[%c0_11, %c0_12], %22 {strides = array<i32>} : memref<128x128xf32, #tpu.memory_space<vmem>>, vector<128x128xf32>,
    } else {
    }
    %c1_i32 = arith.constant 1 : i32
    %4 = arith.cmpi eq, %arg1, %c1_i32 : i32
    %5 = arith.extui %4 : i1 to i32
    %c0_i32_1 = arith.constant 0 : i32
    %6 = arith.cmpi ne, %5, %c0_i32_1 : i32
    scf.if %6 {
      %c0 = arith.constant 0 : index
      %c0_3 = arith.constant 0 : index
      %10 = vector.load %arg4[%c0, %c0_3] : memref<128x128xf32, #tpu.memory_space<vmem>>, vector<128x128xf32>
      %c127_i32 = arith.constant 127 : i32
      %11 = vector.broadcast %c127_i32 : i32 to vector<128x128xi32>
      %12 = arith.cmpi eq, %0, %11 : vector<128x128xi32>
      %cst = arith.constant 1.000000e+00 : f32
      %13 = vector.broadcast %cst : f32 to vector<128x128xf32>
      %14 = arith.select %12, %13, %10 : vector<128x128xi1>, vector<128x128xf32>
      %15 = arith.truncf %14 : vector<128x128xf32> to vector<128x128xbf16>
      %c0_4 = arith.constant 0 : index
      %c0_5 = arith.constant 0 : index
      %c0_6 = arith.constant 0 : index
      %16 = vector.load %arg3[%c0_4, %c0_5, %c0_6] : memref<1x128x128xbf16, #tpu.memory_space<vmem>>, vector<1x128x128xbf16>
      %17 = vector.shape_cast %16 : vector<1x128x128xbf16> to vector<128x128xbf16>
      %cst_7 = arith.constant dense<0.000000e+00> : vector<128x128xf32>
      %18 = tpu.matmul %15, %17, %cst_7 {dimension_numbers = #tpu.dot_dimension_numbers<[1], [0], [0], [1], [0, 0, 1, 1], [], []>} : vector<128x128xbf16>, vector<128x128xbf16>, vector<128x128xf32> -> vector<128x128xf32>
      %19 = math.tanh %18 : vector<128x128xf32>
      %c0_8 = arith.constant 0 : index
      %c0_9 = arith.constant 0 : index
      %20 = vector.load %arg4[%c0_8, %c0_9] : memref<128x128xf32, #tpu.memory_space<vmem>>, vector<128x128xf32>
      tpu.vector_store %arg4[%c0_8, %c0_9], %19 {strides = array<i32>} : memref<128x128xf32, #tpu.memory_space<vmem>>, vector<128x128xf32>,
    } else {
    }
    %c2_i32 = arith.constant 2 : i32
    %7 = arith.cmpi eq, %arg1, %c2_i32 : i32
    %8 = arith.extui %7 : i1 to i32
    %c0_i32_2 = arith.constant 0 : i32
    %9 = arith.cmpi ne, %8, %c0_i32_2 : i32
    scf.if %9 {
      %c0 = arith.constant 0 : index
      %c0_3 = arith.constant 0 : index
      %10 = vector.load %arg4[%c0, %c0_3] : memref<128x128xf32, #tpu.memory_space<vmem>>, vector<128x128xf32>
      %c0_4 = arith.constant 0 : index
      %c0_5 = arith.constant 0 : index
      %c0_6 = arith.constant 0 : index
      %11 = vector.load %arg5[%c0_4, %c0_5, %c0_6] : memref<1x128x128xf32, #tpu.memory_space<vmem>>, vector<1x128x128xf32>
      %12 = vector.shape_cast %11 : vector<1x128x128xf32> to vector<128x128xf32>
      %c4_i32 = arith.constant 4 : i32
      %13 = tpu.dynamic_rotate %12 by %c4_i32 dim 1 : vector<128x128xf32>, i32 -> vector<128x128xf32>
      %c5_i32 = arith.constant 5 : i32
      %14 = vector.broadcast %c5_i32 : i32 to vector<128x128xi32>
      %15 = arith.cmpi eq, %0, %14 : vector<128x128xi32>
      %16 = arith.select %15, %13, %10 : vector<128x128xi1>, vector<128x128xf32>
      %c127_i32 = arith.constant 127 : i32
      %17 = vector.broadcast %c127_i32 : i32 to vector<128x128xi32>
      %18 = arith.cmpi eq, %0, %17 : vector<128x128xi32>
      %cst = arith.constant 1.000000e+00 : f32
      %19 = vector.broadcast %cst : f32 to vector<128x128xf32>
      %20 = arith.select %18, %19, %16 : vector<128x128xi1>, vector<128x128xf32>
      %21 = arith.truncf %20 : vector<128x128xf32> to vector<128x128xbf16>
      %c0_7 = arith.constant 0 : index
      %c0_8 = arith.constant 0 : index
      %c0_9 = arith.constant 0 : index
      %22 = vector.load %arg3[%c0_7, %c0_8, %c0_9] : memref<1x128x128xbf16, #tpu.memory_space<vmem>>, vector<1x128x128xbf16>
      %23 = vector.shape_cast %22 : vector<1x128x128xbf16> to vector<128x128xbf16>
      %cst_10 = arith.constant dense<0.000000e+00> : vector<128x128xf32>
      %24 = tpu.matmul %21, %23, %cst_10 {dimension_numbers = #tpu.dot_dimension_numbers<[1], [0], [0], [1], [0, 0, 1, 1], [], []>} : vector<128x128xbf16>, vector<128x128xbf16>, vector<128x128xf32> -> vector<128x128xf32>
      %c0_11 = arith.constant 0 : index
      %c0_12 = arith.constant 0 : index
      %25 = vector.load %arg4[%c0_11, %c0_12] : memref<128x128xf32, #tpu.memory_space<vmem>>, vector<128x128xf32>
      tpu.vector_store %arg4[%c0_11, %c0_12], %24 {strides = array<i32>} : memref<128x128xf32, #tpu.memory_space<vmem>>, vector<128x128xf32>,
    } else {
    }
    return
  }
  func.func @transform_0(%arg0: i32, %arg1: i32) -> (i32, i32) {
    %c0_i32 = arith.constant 0 : i32
    %c0_i32_0 = arith.constant 0 : i32
    return %arg0, %c0_i32 : i32, i32
  }
  func.func @transform_1(%arg0: i32, %arg1: i32) -> (i32, i32, i32) {
    %c0_i32 = arith.constant 0 : i32
    %c0_i32_0 = arith.constant 0 : i32
    %c0_i32_1 = arith.constant 0 : i32
    return %arg1, %c0_i32, %c0_i32_0 : i32, i32, i32
  }
  func.func @transform_2(%arg0: i32, %arg1: i32) -> (i32, i32) {
    %c0_i32 = arith.constant 0 : i32
    %c0_i32_0 = arith.constant 0 : i32
    return %arg0, %c0_i32 : i32, i32
  }
}

</mosaic_0001>

<llo_original>
// kernel: forward.1
$region0: #{forward.1}
  #allocation0 [shape = 'u32[]', space=smem, size = 0x4, offset = 0x4, fixed_abs, tag = 'smem constant byte address 0x4 - core index']
  #allocation1 [shape = 'u32[144,128]{1,0:T(1,128)}', space=vmem, size = 0x12000, scoped, tag = 'internal scratch']
  #allocation2 [shape = 'f32[1,128,128]{2,1,0:T(8,128)}', space=vmem, size = 0x10000, scoped, tag = 'scratch operand']
  %s0 = inlined_call_operand.vmem [shape: f32[256,128], index: 0, kind: input, shape index: {}]
  %s1 = inlined_call_operand.vmem [shape: bf16[3,128,128], index: 1, kind: input, shape index: {}]
  %s2 = inlined_call_operand.vmem [shape: f32[256,128], index: 2, kind: output, shape index: {}]
  %s3 = sld [smem:[#allocation0]]
  $region53: #{forward.1} parent=0
    _
  %s5 = ssub.s32 1, %s3
  %s6 = scalar_select 0, %s5, %s3
  loop: start=0, step=1, limit=8
  $region2: #{forward.1} parent=0 // loop_pre_header
    _
  $region3: #{forward.1} parent=0 // loop_header
    %s8 = sphi 0, %s12
    %p9 = scmp.ge.s32.totalorder %s8, 8
    %s15 = sphi 0, %s27
    %s16 = sphi 0, %s23
    %s17 = sphi 0, %s15
    %s18 = sphi 0, %s16
    %s19 = sphi 0, %s17
    %s20 = sphi 0, %s18
    %s30 = sphi 0, %s32
    %s33 = sphi 0, %s30
    %s34 = sphi 0, %s33
    %s50 = sphi 0, %s34
    %s56 = sphi 0, %s58
    %s59 = sphi 0, %s56
    %s60 = sphi 0, %s59
    %s76 = sphi 0, %s60
    %s82 = sphi 0, %s84
    %s85 = sphi 0, %s82
    %s86 = sphi 0, %s85
    %s102 = sphi 0, %s86
  $region4: #{forward.1} parent=0 // loop_header_branch
    %11 = sbr.rel (%p9) target = $region8
  $region5: #{forward.1} parent=0 // loop_body
    %s13 = ssub.s32 %s8, 1
    %s14 = ssub.s32 %s8, 2
    %s21 = sadd.s32 1, %s16
    %p22 = scmp.ge.s32.totalorder %s21, 3
    %s23 = scalar_select %p22, 0, %s21
    %s24 = sadd.s32 1, %s15
    %s25 = scalar_select %p22, %s24, %s15
    %p26 = scmp.ge.s32.totalorder %s25, 2
    %s27 = scalar_select %p26, 0, %s25
    %s28 = ssub.s32 %s15, %s27
    %p29 = scmp.eq.s32.totalorder %s28, 0
    %s31 = sadd.s32 %s30, 1
    %s32 = scalar_select %p29, %s30, %s31
    %p35 = pneg %p29
    %p36 = scmp.eq.s32.totalorder %s8, 5
    %p37 = por %p35, %p36
    %p38 = scmp.ne.s32.totalorder %s30, %s33
    %p39 = scmp.eq.s32.totalorder %s8, 0
    %p40 = por %p38, %p39
    %p41 = scmp.ne.s32.totalorder %s30, %s33
    %p42 = scmp.eq.s32.totalorder %s13, 5
    %p43 = por %p41, %p42
    %p44 = scmp.ne.s32.totalorder %s33, %s34
    %p45 = scmp.eq.s32.totalorder %s13, 0
    %p46 = por %p44, %p45
    %p47 = scmp.ne.s32.totalorder %s33, %s34
    %p48 = scmp.eq.s32.totalorder %s14, 5
    %p49 = por %p47, %p48
    %p51 = scmp.ne.s32.totalorder %s34, %s50
    %p52 = scmp.eq.s32.totalorder %s14, 0
    %p53 = por %p51, %p52
    %s54 = ssub.s32 %s16, %s23
    %p55 = scmp.eq.s32.totalorder %s54, 0
    %s57 = sadd.s32 %s56, 1
    %s58 = scalar_select %p55, %s56, %s57
    %p61 = pneg %p55
    %p62 = scmp.eq.s32.totalorder %s8, 5
    %p63 = por %p61, %p62
    %p64 = scmp.ne.s32.totalorder %s56, %s59
    %p65 = scmp.eq.s32.totalorder %s8, 0
    %p66 = por %p64, %p65
    %p67 = scmp.ne.s32.totalorder %s56, %s59
    %p68 = scmp.eq.s32.totalorder %s13, 5
    %p69 = por %p67, %p68
    %p70 = scmp.ne.s32.totalorder %s59, %s60
    %p71 = scmp.eq.s32.totalorder %s13, 0
    %p72 = por %p70, %p71
    %p73 = scmp.ne.s32.totalorder %s59, %s60
    %p74 = scmp.eq.s32.totalorder %s14, 5
    %p75 = por %p73, %p74
    %p77 = scmp.ne.s32.totalorder %s60, %s76
    %p78 = scmp.eq.s32.totalorder %s14, 0
    %p79 = por %p77, %p78
    %s80 = ssub.s32 %s15, %s27
    %p81 = scmp.eq.s32.totalorder %s80, 0
    %s83 = sadd.s32 %s82, 1
    %s84 = scalar_select %p81, %s82, %s83
    %p87 = pneg %p81
    %p88 = scmp.eq.s32.totalorder %s8, 5
    %p89 = por %p87, %p88
    %p90 = scmp.ne.s32.totalorder %s82, %s85
    %p91 = scmp.eq.s32.totalorder %s8, 0
    %p92 = por %p90, %p91
    %p93 = scmp.ne.s32.totalorder %s82, %s85
    %p94 = scmp.eq.s32.totalorder %s13, 5
    %p95 = por %p93, %p94
    %p96 = scmp.ne.s32.totalorder %s85, %s86
    %p97 = scmp.eq.s32.totalorder %s13, 0
    %p98 = por %p96, %p97
    %p99 = scmp.ne.s32.totalorder %s85, %s86
    %p100 = scmp.eq.s32.totalorder %s14, 5
    %p101 = por %p99, %p100
    %p103 = scmp.ne.s32.totalorder %s86, %s102
    %p104 = scmp.eq.s32.totalorder %s14, 0
    %p105 = por %p103, %p104
    %p106 = scmp.le.s32.totalorder 1, %s8
    %p107 = scmp.lt.s32.totalorder %s8, 7
    %p108 = pnand %p106, %p107
    %p109 = pneg %p108
    // Predicated region
    $region9: #{forward.1} parent=5 // pred_check
      _
    $region10: #{forward.1} parent=5 // pred_check_branch
      %111 = sbr.rel (%p108) target = $region12
    $region11: #{forward.1} parent=5 // pred_region
      %s112 = ssub.s32 %s8, 1
    $region12: #{forward.1} parent=5 // pred_fallthru
      _
    %p113 = scmp.lt.s32.totalorder %s8, 6
    // Predicated region
    $region13: #{forward.1} parent=5 // pred_check
      %p114 = pneg %p113
    $region14: #{forward.1} parent=5 // pred_check_branch
      %116 = sbr.rel (%p114) target = $region16
    $region15: #{forward.1} parent=5 // pred_region
      // Predicated region
      $region17: #{forward.1} parent=15 // pred_check
        %p117 = pneg %p40
      $region18: #{forward.1} parent=15 // pred_check_branch
        %119 = sbr.rel (%p117) target = $region20
      $region19: #{forward.1} parent=15 // pred_region
        %s120 = smul.u32 16, %s15
        %p121 = scmp.lt.s32.totalorder %s120, 31
        %s122 = scalar_select %p121, %s120, 31
        %s123 = smul.addr %s122, 8
        %s124 = scalar_lea.vmem %s0, %s123
        %s125 = smul.u32 16, %s15
      $region20: #{forward.1} parent=15 // pred_fallthru
        _
      // Predicated region
      $region21: #{forward.1} parent=15 // pred_check
        %p126 = pneg %p66
      $region22: #{forward.1} parent=15 // pred_check_branch
        %128 = sbr.rel (%p126) target = $region24
      $region23: #{forward.1} parent=15 // pred_region
        %p129 = scmp.lt.s32.totalorder %s16, 2
        %s130 = scalar_select %p129, %s16, 2
        %s131 = smul.addr %s130, 16
        %s132 = smul.addr %s131, 4
        %s133 = scalar_lea.vmem %s1, %s132
      $region24: #{forward.1} parent=15 // pred_fallthru
        _
    $region16: #{forward.1} parent=5 // pred_fallthru
      _
    %p134 = scmp.le.s32.totalorder 1, %s8
    %p135 = scmp.lt.s32.totalorder %s8, 7
    %p136 = pnand %p134, %p135
    %p137 = pneg %p136
    // Predicated region
    $region25: #{forward.1} parent=5 // pred_check
      _
    $region26: #{forward.1} parent=5 // pred_check_branch
      %139 = sbr.rel (%p136) target = $region28
    $region27: #{forward.1} parent=5 // pred_region
      %s140 = ssub.s32 %s8, 1
      %s141 = smul.u32 16, %s17
      %p142 = scmp.lt.s32.totalorder %s141, 31
      %s143 = scalar_select %p142, %s141, 31
      %s144 = smul.addr %s143, 8
      %s145 = scalar_lea.vmem %s0, %s144
      %p146 = pneg %p46
      %p147 = pneg %p43
      %p148 = scmp.lt.s32.totalorder %s18, 2
      %s149 = scalar_select %p148, %s18, 2
      %s150 = smul.addr %s149, 16
      %s151 = smul.addr %s150, 4
      %s152 = scalar_lea.vmem %s1, %s151
      %p153 = pneg %p72
      %p154 = pneg %p69
      %p155 = pneg %p98
      %p156 = pneg %p95
      %s157 = smul.u32 16, %s17
      %p158 = scmp.lt.s32.totalorder %s157, 31
      %s159 = scalar_select %p158, %s157, 31
      %s160 = smul.addr %s159, 8
      %s161 = scalar_lea.vmem %s2, %s160
      %s162 = smul.u32 16, %s17
      %p163 = scmp.lt.s32.totalorder %s162, 31
      %s164 = scalar_select %p163, %s162, 31
      %s165 = smul.addr %s164, 8
      %s166 = scalar_lea.vmem %s0, %s165
      %s167 = smul.u32 16, %s17
      %p168 = scmp.lt.s32.totalorder %s18, 2
      %s169 = scalar_select %p168, %s18, 2
      %s170 = smul.addr %s169, 16
      %s171 = smul.addr %s170, 4
      %s172 = scalar_lea.vmem %s1, %s171
      %s173 = smul.u32 16, %s17
      %p174 = scmp.lt.s32.totalorder %s173, 31
      %s175 = scalar_select %p174, %s173, 31
      %s176 = smul.addr %s175, 8
      %s177 = scalar_lea.vmem %s2, %s176
      %s178 = smul.u32 16, %s17
      %v180 = vlaneseq
      %v181 = vand.u32 %v180, 127
      %p182 = scmp.eq.s32.totalorder %s18, 0
      // Predicated region
      $region29: #{forward.1} parent=27 // pred_check
        %p183 = pneg %p182
      $region30: #{forward.1} parent=27 // pred_check_branch
        %185 = sbr.rel (%p183) target = $region32
      $region31: #{forward.1} parent=27 // pred_region
        %v186 = vld [vmem:[%s166] sm:$0xff]
        %v187 = vld [vmem:[%s166 + $0x8] sm:$0xff]
        %v188 = vld [vmem:[%s166 + $0x10] sm:$0xff]
        %v189 = vld [vmem:[%s166 + $0x18] sm:$0xff]
        %v190 = vld [vmem:[%s166 + $0x20] sm:$0xff]
        %v191 = vld [vmem:[%s166 + $0x28] sm:$0xff]
        %v192 = vld [vmem:[%s166 + $0x30] sm:$0xff]
        %v193 = vld [vmem:[%s166 + $0x38] sm:$0xff]
        %v194 = vld [vmem:[%s166 + $0x40] sm:$0xff]
        %v195 = vld [vmem:[%s166 + $0x48] sm:$0xff]
        %v196 = vld [vmem:[%s166 + $0x50] sm:$0xff]
        %v197 = vld [vmem:[%s166 + $0x58] sm:$0xff]
        %v198 = vld [vmem:[%s166 + $0x60] sm:$0xff]
        %v199 = vld [vmem:[%s166 + $0x68] sm:$0xff]
        %v200 = vld [vmem:[%s166 + $0x70] sm:$0xff]
        %v201 = vld [vmem:[%s166 + $0x78] sm:$0xff]
        %202 = vst [vmem:[#allocation2] sm:$0xff] %v186
        %203 = vst [vmem:[#allocation2 + $0x8] sm:$0xff] %v187
        %204 = vst [vmem:[#allocation2 + $0x10] sm:$0xff] %v188
        %205 = vst [vmem:[#allocation2 + $0x18] sm:$0xff] %v189
        %206 = vst [vmem:[#allocation2 + $0x20] sm:$0xff] %v190
        %207 = vst [vmem:[#allocation2 + $0x28] sm:$0xff] %v191
        %208 = vst [vmem:[#allocation2 + $0x30] sm:$0xff] %v192
        %209 = vst [vmem:[#allocation2 + $0x38] sm:$0xff] %v193
        %210 = vst [vmem:[#allocation2 + $0x40] sm:$0xff] %v194
        %211 = vst [vmem:[#allocation2 + $0x48] sm:$0xff] %v195
        %212 = vst [vmem:[#allocation2 + $0x50] sm:$0xff] %v196
        %213 = vst [vmem:[#allocation2 + $0x58] sm:$0xff] %v197
        %214 = vst [vmem:[#allocation2 + $0x60] sm:$0xff] %v198
        %215 = vst [vmem:[#allocation2 + $0x68] sm:$0xff] %v199
        %216 = vst [vmem:[#allocation2 + $0x70] sm:$0xff] %v200
        %217 = vst [vmem:[#allocation2 + $0x78] sm:$0xff] %v201
        %vm218 = vcmp.eq.s32.totalorder %v181, 127
        %v219 = vsel %vm218, 1.0, %v186
        %v220 = vsel %vm218, 1.0, %v187
        %v221 = vsel %vm218, 1.0, %v188
        %v222 = vsel %vm218, 1.0, %v189
        %v223 = vsel %vm218, 1.0, %v190
        %v224 = vsel %vm218, 1.0, %v191
        %v225 = vsel %vm218, 1.0, %v192
        %v226 = vsel %vm218, 1.0, %v193
        %v227 = vsel %vm218, 1.0, %v194
        %v228 = vsel %vm218, 1.0, %v195
        %v229 = vsel %vm218, 1.0, %v196
        %v230 = vsel %vm218, 1.0, %v197
        %v231 = vsel %vm218, 1.0, %v198
        %v232 = vsel %vm218, 1.0, %v199
        %v233 = vsel %vm218, 1.0, %v200
        %v234 = vsel %vm218, 1.0, %v201
        %v235 = vpack.c.bf16 %v220, %v219
        %v236 = vpack.c.bf16 %v222, %v221
        %v237 = vpack.c.bf16 %v224, %v223
        %v238 = vpack.c.bf16 %v226, %v225
        %v239 = vpack.c.bf16 %v228, %v227
        %v240 = vpack.c.bf16 %v230, %v229
        %v241 = vpack.c.bf16 %v232, %v231
        %v242 = vpack.c.bf16 %v234, %v233
        %v243 = vld [vmem:[%s172] sm:$0xf]
        %v244 = vld [vmem:[%s172 + $0x4] sm:$0xf]
        %v245 = vld [vmem:[%s172 + $0x8] sm:$0xf]
        %v246 = vld [vmem:[%s172 + $0xc] sm:$0xf]
        %v247 = vld [vmem:[%s172 + $0x10] sm:$0xf]
        %v248 = vld [vmem:[%s172 + $0x14] sm:$0xf]
        %v249 = vld [vmem:[%s172 + $0x18] sm:$0xf]
        %v250 = vld [vmem:[%s172 + $0x1c] sm:$0xf]
        %v251 = vld [vmem:[%s172 + $0x20] sm:$0xf]
        %v252 = vld [vmem:[%s172 + $0x24] sm:$0xf]
        %v253 = vld [vmem:[%s172 + $0x28] sm:$0xf]
        %v254 = vld [vmem:[%s172 + $0x2c] sm:$0xf]
        %v255 = vld [vmem:[%s172 + $0x30] sm:$0xf]
        %v256 = vld [vmem:[%s172 + $0x34] sm:$0xf]
        %v257 = vld [vmem:[%s172 + $0x38] sm:$0xf]
        %v258 = vld [vmem:[%s172 + $0x3c] sm:$0xf]
        %v275 = vunpack.c.l.b16 %v243
        %v276 = vunpack.c.l.b16 %v244
        %v277 = vunpack.c.l.b16 %v245
        %v278 = vunpack.c.l.b16 %v246
        %v279 = vunpack.c.l.b16 %v247
        %v280 = vunpack.c.l.b16 %v248
        %v281 = vunpack.c.l.b16 %v249
        %v282 = vunpack.c.l.b16 %v250
        %v283 = vunpack.c.l.b16 %v251
        %v284 = vunpack.c.l.b16 %v252
        %v285 = vunpack.c.l.b16 %v253
        %v286 = vunpack.c.l.b16 %v254
        %v287 = vunpack.c.l.b16 %v255
        %v288 = vunpack.c.l.b16 %v256
        %v289 = vunpack.c.l.b16 %v257
        %v290 = vunpack.c.l.b16 %v258
        %v291 = vpack.c.b16 %v276, %v275
        %v292 = vpack.c.b16 %v278, %v277
        %v293 = vpack.c.b16 %v280, %v279
        %v294 = vpack.c.b16 %v282, %v281
        %v295 = vpack.c.b16 %v284, %v283
        %v296 = vpack.c.b16 %v286, %v285
        %v297 = vpack.c.b16 %v288, %v287
        %v298 = vpack.c.b16 %v290, %v289
        %307 = vmatprep.subr.bf16.mxu0 0
        %308 = vmatpush1.bf16.msra.mxu0 %v298
        %309 = vmatprep.subr.bf16.mxu0 0
        %310 = vmatpush1.bf16.msra.mxu0 %v297
        %311 = vmatprep.subr.bf16.mxu0 0
        %312 = vmatpush1.bf16.msra.mxu0 %v296
        %313 = vmatprep.subr.bf16.mxu0 0
        %314 = vmatpush1.bf16.msra.mxu0 %v295
        %315 = vmatprep.subr.bf16.mxu0 0
        %316 = vmatpush1.bf16.msra.mxu0 %v294
        %317 = vmatprep.subr.bf16.mxu0 0
        %318 = vmatpush1.bf16.msra.mxu0 %v293
        %319 = vmatprep.subr.bf16.mxu0 0
        %320 = vmatpush1.bf16.msra.mxu0 %v292
        %321 = vmatprep.subr.bf16.mxu0 0
        %322 = vmatpush1.bf16.msra.mxu0 %v291
        %323 = vmatprep.subr.bf16.mxu0 0
        %324 = vmatpush2.bf16.msra.mxu0 0
        %325 = vmatprep.subr.bf16.mxu0 0
        %326 = vmatpush2.bf16.msra.mxu0 0
        %327 = vmatprep.subr.bf16.mxu0 0
        %328 = vmatpush2.bf16.msra.mxu0 0
        %329 = vmatprep.subr.bf16.mxu0 0
        %330 = vmatpush2.bf16.msra.mxu0 0
        %331 = vmatprep.subr.bf16.mxu0 0
        %332 = vmatpush2.bf16.msra.mxu0 0
        %333 = vmatprep.subr.bf16.mxu0 0
        %334 = vmatpush2.bf16.msra.mxu0 0
        %335 = vmatprep.subr.bf16.mxu0 0
        %336 = vmatpush2.bf16.msra.mxu0 0
        %337 = vmatprep.subr.bf16.mxu0 0
        %338 = vmatpush2.bf16.msra.mxu0 0
        %339 = vmatprep.mubr.bf16.mxu0 0
        %340 = vmatmul.mubr.bf16.gmra.mxu0 %v235
        %v341 = vpop.f32.mrf.mxu0
        %v342 = vadd.f32 0.0, %v341
        %v343 = vpop.f32.mrf.mxu0
        %v344 = vpop.f32.mrf.mxu0
        %v345 = vadd.f32 0.0, %v344
        %v346 = vpop.f32.mrf.mxu0
        %347 = vmatprep.mubr.bf16.mxu0 0
        %348 = vmatmul.mubr.bf16.gmra.mxu0 %v236
        %v349 = vpop.f32.mrf.mxu0
        %v350 = vadd.f32 0.0, %v349
        %v351 = vpop.f32.mrf.mxu0
        %v352 = vpop.f32.mrf.mxu0
        %v353 = vadd.f32 0.0, %v352
        %v354 = vpop.f32.mrf.mxu0
        %355 = vmatprep.mubr.bf16.mxu0 0
        %356 = vmatmul.mubr.bf16.gmra.mxu0 %v237
        %v357 = vpop.f32.mrf.mxu0
        %v358 = vadd.f32 0.0, %v357
        %v359 = vpop.f32.mrf.mxu0
        %v360 = vpop.f32.mrf.mxu0
        %v361 = vadd.f32 0.0, %v360
        %v362 = vpop.f32.mrf.mxu0
        %363 = vmatprep.mubr.bf16.mxu0 0
        %364 = vmatmul.mubr.bf16.gmra.mxu0 %v238
        %v365 = vpop.f32.mrf.mxu0
        %v366 = vadd.f32 0.0, %v365
        %v367 = vpop.f32.mrf.mxu0
        %v368 = vpop.f32.mrf.mxu0
        %v369 = vadd.f32 0.0, %v368
        %v370 = vpop.f32.mrf.mxu0
        %371 = vmatprep.mubr.bf16.mxu0 0
        %372 = vmatmul.mubr.bf16.gmra.mxu0 %v239
        %v373 = vpop.f32.mrf.mxu0
        %v374 = vadd.f32 0.0, %v373
        %v375 = vpop.f32.mrf.mxu0
        %v376 = vpop.f32.mrf.mxu0
        %v377 = vadd.f32 0.0, %v376
        %v378 = vpop.f32.mrf.mxu0
        %379 = vmatprep.mubr.bf16.mxu0 0
        %380 = vmatmul.mubr.bf16.gmra.mxu0 %v240
        %v381 = vpop.f32.mrf.mxu0
        %v382 = vadd.f32 0.0, %v381
        %v383 = vpop.f32.mrf.mxu0
        %v384 = vpop.f32.mrf.mxu0
        %v385 = vadd.f32 0.0, %v384
        %v386 = vpop.f32.mrf.mxu0
        %387 = vmatprep.mubr.bf16.mxu0 0
        %388 = vmatmul.mubr.bf16.gmra.mxu0 %v241
        %v389 = vpop.f32.mrf.mxu0
        %v390 = vadd.f32 0.0, %v389
        %v391 = vpop.f32.mrf.mxu0
        %v392 = vpop.f32.mrf.mxu0
        %v393 = vadd.f32 0.0, %v392
        %v394 = vpop.f32.mrf.mxu0
        %395 = vmatprep.mubr.bf16.mxu0 0
        %396 = vmatmul.mubr.bf16.gmra.mxu0 %v242
        %v397 = vpop.f32.mrf.mxu0
        %v398 = vadd.f32 0.0, %v397
        %v399 = vpop.f32.mrf.mxu0
        %v400 = vpop.f32.mrf.mxu0
        %v401 = vadd.f32 0.0, %v400
        %v402 = vpop.f32.mrf.mxu0
        %403 = vdwg.mxu0
        %v404 = vtanh.pop %v342
        %v405 = vtanh.pop %v345
        %v406 = vtanh.pop %v350
        %v407 = vtanh.pop %v353
        %v408 = vtanh.pop %v358
        %v409 = vtanh.pop %v361
        %v410 = vtanh.pop %v366
        %v411 = vtanh.pop %v369
        %v412 = vtanh.pop %v374
        %v413 = vtanh.pop %v377
        %v414 = vtanh.pop %v382
        %v415 = vtanh.pop %v385
        %v416 = vtanh.pop %v390
        %v417 = vtanh.pop %v393
        %v418 = vtanh.pop %v398
        %v419 = vtanh.pop %v401
        %420 = vst [vmem:[%s177] sm:$0xff] %v404
        %421 = vst [vmem:[%s177 + $0x8] sm:$0xff] %v405
        %422 = vst [vmem:[%s177 + $0x10] sm:$0xff] %v406
        %423 = vst [vmem:[%s177 + $0x18] sm:$0xff] %v407
        %424 = vst [vmem:[%s177 + $0x20] sm:$0xff] %v408
        %425 = vst [vmem:[%s177 + $0x28] sm:$0xff] %v409
        %426 = vst [vmem:[%s177 + $0x30] sm:$0xff] %v410
        %427 = vst [vmem:[%s177 + $0x38] sm:$0xff] %v411
        %428 = vst [vmem:[%s177 + $0x40] sm:$0xff] %v412
        %429 = vst [vmem:[%s177 + $0x48] sm:$0xff] %v413
        %430 = vst [vmem:[%s177 + $0x50] sm:$0xff] %v414
        %431 = vst [vmem:[%s177 + $0x58] sm:$0xff] %v415
        %432 = vst [vmem:[%s177 + $0x60] sm:$0xff] %v416
        %433 = vst [vmem:[%s177 + $0x68] sm:$0xff] %v417
        %434 = vst [vmem:[%s177 + $0x70] sm:$0xff] %v418
        %435 = vst [vmem:[%s177 + $0x78] sm:$0xff] %v419
      $region32: #{forward.1} parent=27 // pred_fallthru
        _
      %p436 = scmp.eq.s32.totalorder %s18, 1
      // Predicated region
      $region33: #{forward.1} parent=27 // pred_check
        %p437 = pneg %p436
      $region34: #{forward.1} parent=27 // pred_check_branch
        %439 = sbr.rel (%p437) target = $region36
      $region35: #{forward.1} parent=27 // pred_region
        %v440 = vld [vmem:[%s177] sm:$0xff]
        %v441 = vld [vmem:[%s177 + $0x8] sm:$0xff]
        %v442 = vld [vmem:[%s177 + $0x10] sm:$0xff]
        %v443 = vld [vmem:[%s177 + $0x18] sm:$0xff]
        %v444 = vld [vmem:[%s177 + $0x20] sm:$0xff]
        %v445 = vld [vmem:[%s177 + $0x28] sm:$0xff]
        %v446 = vld [vmem:[%s177 + $0x30] sm:$0xff]
        %v447 = vld [vmem:[%s177 + $0x38] sm:$0xff]
        %v448 = vld [vmem:[%s177 + $0x40] sm:$0xff]
        %v449 = vld [vmem:[%s177 + $0x48] sm:$0xff]
        %v450 = vld [vmem:[%s177 + $0x50] sm:$0xff]
        %v451 = vld [vmem:[%s177 + $0x58] sm:$0xff]
        %v452 = vld [vmem:[%s177 + $0x60] sm:$0xff]
        %v453 = vld [vmem:[%s177 + $0x68] sm:$0xff]
        %v454 = vld [vmem:[%s177 + $0x70] sm:$0xff]
        %v455 = vld [vmem:[%s177 + $0x78] sm:$0xff]
        %vm456 = vcmp.eq.s32.totalorder %v181, 127
        %v457 = vsel %vm456, 1.0, %v440
        %v458 = vsel %vm456, 1.0, %v441
        %v459 = vsel %vm456, 1.0, %v442
        %v460 = vsel %vm456, 1.0, %v443
        %v461 = vsel %vm456, 1.0, %v444
        %v462 = vsel %vm456, 1.0, %v445
        %v463 = vsel %vm456, 1.0, %v446
        %v464 = vsel %vm456, 1.0, %v447
        %v465 = vsel %vm456, 1.0, %v448
        %v466 = vsel %vm456, 1.0, %v449
        %v467 = vsel %vm456, 1.0, %v450
        %v468 = vsel %vm456, 1.0, %v451
        %v469 = vsel %vm456, 1.0, %v452
        %v470 = vsel %vm456, 1.0, %v453
        %v471 = vsel %vm456, 1.0, %v454
        %v472 = vsel %vm456, 1.0, %v455
        %v473 = vpack.c.bf16 %v458, %v457
        %v474 = vpack.c.bf16 %v460, %v459
        %v475 = vpack.c.bf16 %v462, %v461
        %v476 = vpack.c.bf16 %v464, %v463
        %v477 = vpack.c.bf16 %v466, %v465
        %v478 = vpack.c.bf16 %v468, %v467
        %v479 = vpack.c.bf16 %v470, %v469
        %v480 = vpack.c.bf16 %v472, %v471
        %v481 = vld [vmem:[%s172] sm:$0xf]
        %v482 = vld [vmem:[%s172 + $0x4] sm:$0xf]
        %v483 = vld [vmem:[%s172 + $0x8] sm:$0xf]
        %v484 = vld [vmem:[%s172 + $0xc] sm:$0xf]
        %v485 = vld [vmem:[%s172 + $0x10] sm:$0xf]
        %v486 = vld [vmem:[%s172 + $0x14] sm:$0xf]
        %v487 = vld [vmem:[%s172 + $0x18] sm:$0xf]
        %v488 = vld [vmem:[%s172 + $0x1c] sm:$0xf]
        %v489 = vld [vmem:[%s172 + $0x20] sm:$0xf]
        %v490 = vld [vmem:[%s172 + $0x24] sm:$0xf]
        %v491 = vld [vmem:[%s172 + $0x28] sm:$0xf]
        %v492 = vld [vmem:[%s172 + $0x2c] sm:$0xf]
        %v493 = vld [vmem:[%s172 + $0x30] sm:$0xf]
        %v494 = vld [vmem:[%s172 + $0x34] sm:$0xf]
        %v495 = vld [vmem:[%s172 + $0x38] sm:$0xf]
        %v496 = vld [vmem:[%s172 + $0x3c] sm:$0xf]
        %v513 = vunpack.c.l.b16 %v481
        %v514 = vunpack.c.l.b16 %v482
        %v515 = vunpack.c.l.b16 %v483
        %v516 = vunpack.c.l.b16 %v484
        %v517 = vunpack.c.l.b16 %v485
        %v518 = vunpack.c.l.b16 %v486
        %v519 = vunpack.c.l.b16 %v487
        %v520 = vunpack.c.l.b16 %v488
        %v521 = vunpack.c.l.b16 %v489
        %v522 = vunpack.c.l.b16 %v490
        %v523 = vunpack.c.l.b16 %v491
        %v524 = vunpack.c.l.b16 %v492
        %v525 = vunpack.c.l.b16 %v493
        %v526 = vunpack.c.l.b16 %v494
        %v527 = vunpack.c.l.b16 %v495
        %v528 = vunpack.c.l.b16 %v496
        %v529 = vpack.c.b16 %v514, %v513
        %v530 = vpack.c.b16 %v516, %v515
        %v531 = vpack.c.b16 %v518, %v517
        %v532 = vpack.c.b16 %v520, %v519
        %v533 = vpack.c.b16 %v522, %v521
        %v534 = vpack.c.b16 %v524, %v523
        %v535 = vpack.c.b16 %v526, %v525
        %v536 = vpack.c.b16 %v528, %v527
        %545 = vmatprep.subr.bf16.mxu0 0
        %546 = vmatpush1.bf16.msra.mxu0 %v536
        %547 = vmatprep.subr.bf16.mxu0 0
        %548 = vmatpush1.bf16.msra.mxu0 %v535
        %549 = vmatprep.subr.bf16.mxu0 0
        %550 = vmatpush1.bf16.msra.mxu0 %v534
        %551 = vmatprep.subr.bf16.mxu0 0
        %552 = vmatpush1.bf16.msra.mxu0 %v533
        %553 = vmatprep.subr.bf16.mxu0 0
        %554 = vmatpush1.bf16.msra.mxu0 %v532
        %555 = vmatprep.subr.bf16.mxu0 0
        %556 = vmatpush1.bf16.msra.mxu0 %v531
        %557 = vmatprep.subr.bf16.mxu0 0
        %558 = vmatpush1.bf16.msra.mxu0 %v530
        %559 = vmatprep.subr.bf16.mxu0 0
        %560 = vmatpush1.bf16.msra.mxu0 %v529
        %561 = vmatprep.subr.bf16.mxu0 0
        %562 = vmatpush2.bf16.msra.mxu0 0
        %563 = vmatprep.subr.bf16.mxu0 0
        %564 = vmatpush2.bf16.msra.mxu0 0
        %565 = vmatprep.subr.bf16.mxu0 0
        %566 = vmatpush2.bf16.msra.mxu0 0
        %567 = vmatprep.subr.bf16.mxu0 0
        %568 = vmatpush2.bf16.msra.mxu0 0
        %569 = vmatprep.subr.bf16.mxu0 0
        %570 = vmatpush2.bf16.msra.mxu0 0
        %571 = vmatprep.subr.bf16.mxu0 0
        %572 = vmatpush2.bf16.msra.mxu0 0
        %573 = vmatprep.subr.bf16.mxu0 0
        %574 = vmatpush2.bf16.msra.mxu0 0
        %575 = vmatprep.subr.bf16.mxu0 0
        %576 = vmatpush2.bf16.msra.mxu0 0
        %577 = vmatprep.mubr.bf16.mxu0 0
        %578 = vmatmul.mubr.bf16.gmra.mxu0 %v473
        %v579 = vpop.f32.mrf.mxu0
        %v580 = vadd.f32 0.0, %v579
        %v581 = vpop.f32.mrf.mxu0
        %v582 = vpop.f32.mrf.mxu0
        %v583 = vadd.f32 0.0, %v582
        %v584 = vpop.f32.mrf.mxu0
        %585 = vmatprep.mubr.bf16.mxu0 0
        %586 = vmatmul.mubr.bf16.gmra.mxu0 %v474
        %v587 = vpop.f32.mrf.mxu0
        %v588 = vadd.f32 0.0, %v587
        %v589 = vpop.f32.mrf.mxu0
        %v590 = vpop.f32.mrf.mxu0
        %v591 = vadd.f32 0.0, %v590
        %v592 = vpop.f32.mrf.mxu0
        %593 = vmatprep.mubr.bf16.mxu0 0
        %594 = vmatmul.mubr.bf16.gmra.mxu0 %v475
        %v595 = vpop.f32.mrf.mxu0
        %v596 = vadd.f32 0.0, %v595
        %v597 = vpop.f32.mrf.mxu0
        %v598 = vpop.f32.mrf.mxu0
        %v599 = vadd.f32 0.0, %v598
        %v600 = vpop.f32.mrf.mxu0
        %601 = vmatprep.mubr.bf16.mxu0 0
        %602 = vmatmul.mubr.bf16.gmra.mxu0 %v476
        %v603 = vpop.f32.mrf.mxu0
        %v604 = vadd.f32 0.0, %v603
        %v605 = vpop.f32.mrf.mxu0
        %v606 = vpop.f32.mrf.mxu0
        %v607 = vadd.f32 0.0, %v606
        %v608 = vpop.f32.mrf.mxu0
        %609 = vmatprep.mubr.bf16.mxu0 0
        %610 = vmatmul.mubr.bf16.gmra.mxu0 %v477
        %v611 = vpop.f32.mrf.mxu0
        %v612 = vadd.f32 0.0, %v611
        %v613 = vpop.f32.mrf.mxu0
        %v614 = vpop.f32.mrf.mxu0
        %v615 = vadd.f32 0.0, %v614
        %v616 = vpop.f32.mrf.mxu0
        %617 = vmatprep.mubr.bf16.mxu0 0
        %618 = vmatmul.mubr.bf16.gmra.mxu0 %v478
        %v619 = vpop.f32.mrf.mxu0
        %v620 = vadd.f32 0.0, %v619
        %v621 = vpop.f32.mrf.mxu0
        %v622 = vpop.f32.mrf.mxu0
        %v623 = vadd.f32 0.0, %v622
        %v624 = vpop.f32.mrf.mxu0
        %625 = vmatprep.mubr.bf16.mxu0 0
        %626 = vmatmul.mubr.bf16.gmra.mxu0 %v479
        %v627 = vpop.f32.mrf.mxu0
        %v628 = vadd.f32 0.0, %v627
        %v629 = vpop.f32.mrf.mxu0
        %v630 = vpop.f32.mrf.mxu0
        %v631 = vadd.f32 0.0, %v630
        %v632 = vpop.f32.mrf.mxu0
        %633 = vmatprep.mubr.bf16.mxu0 0
        %634 = vmatmul.mubr.bf16.gmra.mxu0 %v480
        %v635 = vpop.f32.mrf.mxu0
        %v636 = vadd.f32 0.0, %v635
        %v637 = vpop.f32.mrf.mxu0
        %v638 = vpop.f32.mrf.mxu0
        %v639 = vadd.f32 0.0, %v638
        %v640 = vpop.f32.mrf.mxu0
        %641 = vdwg.mxu0
        %v642 = vtanh.pop %v580
        %v643 = vtanh.pop %v583
        %v644 = vtanh.pop %v588
        %v645 = vtanh.pop %v591
        %v646 = vtanh.pop %v596
        %v647 = vtanh.pop %v599
        %v648 = vtanh.pop %v604
        %v649 = vtanh.pop %v607
        %v650 = vtanh.pop %v612
        %v651 = vtanh.pop %v615
        %v652 = vtanh.pop %v620
        %v653 = vtanh.pop %v623
        %v654 = vtanh.pop %v628
        %v655 = vtanh.pop %v631
        %v656 = vtanh.pop %v636
        %v657 = vtanh.pop %v639
        %658 = vst [vmem:[%s177] sm:$0xff] %v642
        %659 = vst [vmem:[%s177 + $0x8] sm:$0xff] %v643
        %660 = vst [vmem:[%s177 + $0x10] sm:$0xff] %v644
        %661 = vst [vmem:[%s177 + $0x18] sm:$0xff] %v645
        %662 = vst [vmem:[%s177 + $0x20] sm:$0xff] %v646
        %663 = vst [vmem:[%s177 + $0x28] sm:$0xff] %v647
        %664 = vst [vmem:[%s177 + $0x30] sm:$0xff] %v648
        %665 = vst [vmem:[%s177 + $0x38] sm:$0xff] %v649
        %666 = vst [vmem:[%s177 + $0x40] sm:$0xff] %v650
        %667 = vst [vmem:[%s177 + $0x48] sm:$0xff] %v651
        %668 = vst [vmem:[%s177 + $0x50] sm:$0xff] %v652
        %669 = vst [vmem:[%s177 + $0x58] sm:$0xff] %v653
        %670 = vst [vmem:[%s177 + $0x60] sm:$0xff] %v654
        %671 = vst [vmem:[%s177 + $0x68] sm:$0xff] %v655
        %672 = vst [vmem:[%s177 + $0x70] sm:$0xff] %v656
        %673 = vst [vmem:[%s177 + $0x78] sm:$0xff] %v657
      $region36: #{forward.1} parent=27 // pred_fallthru
        _
      %p674 = scmp.eq.s32.totalorder %s18, 2
      // Predicated region
      $region37: #{forward.1} parent=27 // pred_check
        %p675 = pneg %p674
      $region38: #{forward.1} parent=27 // pred_check_branch
        %677 = sbr.rel (%p675) target = $region40
      $region39: #{forward.1} parent=27 // pred_region
        %v678 = vld [vmem:[%s177] sm:$0xff]
        %v679 = vld [vmem:[%s177 + $0x8] sm:$0xff]
        %v680 = vld [vmem:[%s177 + $0x10] sm:$0xff]
        %v681 = vld [vmem:[%s177 + $0x18] sm:$0xff]
        %v682 = vld [vmem:[%s177 + $0x20] sm:$0xff]
        %v683 = vld [vmem:[%s177 + $0x28] sm:$0xff]
        %v684 = vld [vmem:[%s177 + $0x30] sm:$0xff]
        %v685 = vld [vmem:[%s177 + $0x38] sm:$0xff]
        %v686 = vld [vmem:[%s177 + $0x40] sm:$0xff]
        %v687 = vld [vmem:[%s177 + $0x48] sm:$0xff]
        %v688 = vld [vmem:[%s177 + $0x50] sm:$0xff]
        %v689 = vld [vmem:[%s177 + $0x58] sm:$0xff]
        %v690 = vld [vmem:[%s177 + $0x60] sm:$0xff]
        %v691 = vld [vmem:[%s177 + $0x68] sm:$0xff]
        %v692 = vld [vmem:[%s177 + $0x70] sm:$0xff]
        %v693 = vld [vmem:[%s177 + $0x78] sm:$0xff]
        %v694 = vld [vmem:[#allocation2] sm:$0xff]
        %v695 = vld [vmem:[#allocation2 + $0x8] sm:$0xff]
        %v696 = vld [vmem:[#allocation2 + $0x10] sm:$0xff]
        %v697 = vld [vmem:[#allocation2 + $0x18] sm:$0xff]
        %v698 = vld [vmem:[#allocation2 + $0x20] sm:$0xff]
        %v699 = vld [vmem:[#allocation2 + $0x28] sm:$0xff]
        %v700 = vld [vmem:[#allocation2 + $0x30] sm:$0xff]
        %v701 = vld [vmem:[#allocation2 + $0x38] sm:$0xff]
        %v702 = vld [vmem:[#allocation2 + $0x40] sm:$0xff]
        %v703 = vld [vmem:[#allocation2 + $0x48] sm:$0xff]
        %v704 = vld [vmem:[#allocation2 + $0x50] sm:$0xff]
        %v705 = vld [vmem:[#allocation2 + $0x58] sm:$0xff]
        %v706 = vld [vmem:[#allocation2 + $0x60] sm:$0xff]
        %v707 = vld [vmem:[#allocation2 + $0x68] sm:$0xff]
        %v708 = vld [vmem:[#allocation2 + $0x70] sm:$0xff]
        %v709 = vld [vmem:[#allocation2 + $0x78] sm:$0xff]
        %710 = vrot.lane.b32.xlu0 %v694, 4
        %v711 = vpop.permute.xlu0 %710
        %712 = vrot.lane.b32.xlu0 %v695, 4
        %v713 = vpop.permute.xlu0 %712
        %714 = vrot.lane.b32.xlu0 %v696, 4
        %v715 = vpop.permute.xlu0 %714
        %716 = vrot.lane.b32.xlu0 %v697, 4
        %v717 = vpop.permute.xlu0 %716
        %718 = vrot.lane.b32.xlu0 %v698, 4
        %v719 = vpop.permute.xlu0 %718
        %720 = vrot.lane.b32.xlu0 %v699, 4
        %v721 = vpop.permute.xlu0 %720
        %722 = vrot.lane.b32.xlu0 %v700, 4
        %v723 = vpop.permute.xlu0 %722
        %724 = vrot.lane.b32.xlu0 %v701, 4
        %v725 = vpop.permute.xlu0 %724
        %726 = vrot.lane.b32.xlu0 %v702, 4
        %v727 = vpop.permute.xlu0 %726
        %728 = vrot.lane.b32.xlu0 %v703, 4
        %v729 = vpop.permute.xlu0 %728
        %730 = vrot.lane.b32.xlu0 %v704, 4
        %v731 = vpop.permute.xlu0 %730
        %732 = vrot.lane.b32.xlu0 %v705, 4
        %v733 = vpop.permute.xlu0 %732
        %734 = vrot.lane.b32.xlu0 %v706, 4
        %v735 = vpop.permute.xlu0 %734
        %736 = vrot.lane.b32.xlu0 %v707, 4
        %v737 = vpop.permute.xlu0 %736
        %738 = vrot.lane.b32.xlu0 %v708, 4
        %v739 = vpop.permute.xlu0 %738
        %740 = vrot.lane.b32.xlu0 %v709, 4
        %v741 = vpop.permute.xlu0 %740
        %vm742 = vcmp.eq.s32.totalorder %v181, 5
        %v743 = vsel %vm742, %v711, %v678
        %v744 = vsel %vm742, %v713, %v679
        %v745 = vsel %vm742, %v715, %v680
        %v746 = vsel %vm742, %v717, %v681
        %v747 = vsel %vm742, %v719, %v682
        %v748 = vsel %vm742, %v721, %v683
        %v749 = vsel %vm742, %v723, %v684
        %v750 = vsel %vm742, %v725, %v685
        %v751 = vsel %vm742, %v727, %v686
        %v752 = vsel %vm742, %v729, %v687
        %v753 = vsel %vm742, %v731, %v688
        %v754 = vsel %vm742, %v733, %v689
        %v755 = vsel %vm742, %v735, %v690
        %v756 = vsel %vm742, %v737, %v691
        %v757 = vsel %vm742, %v739, %v692
        %v758 = vsel %vm742, %v741, %v693
        %vm759 = vcmp.eq.s32.totalorder %v181, 127
        %v760 = vsel %vm759, 1.0, %v743
        %v761 = vsel %vm759, 1.0, %v744
        %v762 = vsel %vm759, 1.0, %v745
        %v763 = vsel %vm759, 1.0, %v746
        %v764 = vsel %vm759, 1.0, %v747
        %v765 = vsel %vm759, 1.0, %v748
        %v766 = vsel %vm759, 1.0, %v749
        %v767 = vsel %vm759, 1.0, %v750
        %v768 = vsel %vm759, 1.0, %v751
        %v769 = vsel %vm759, 1.0, %v752
        %v770 = vsel %vm759, 1.0, %v753
        %v771 = vsel %vm759, 1.0, %v754
        %v772 = vsel %vm759, 1.0, %v755
        %v773 = vsel %vm759, 1.0, %v756
        %v774 = vsel %vm759, 1.0, %v757
        %v775 = vsel %vm759, 1.0, %v758
        %v776 = vpack.c.bf16 %v761, %v760
        %v777 = vpack.c.bf16 %v763, %v762
        %v778 = vpack.c.bf16 %v765, %v764
        %v779 = vpack.c.bf16 %v767, %v766
        %v780 = vpack.c.bf16 %v769, %v768
        %v781 = vpack.c.bf16 %v771, %v770
        %v782 = vpack.c.bf16 %v773, %v772
        %v783 = vpack.c.bf16 %v775, %v774
        %v784 = vld [vmem:[%s172] sm:$0xf]
        %v785 = vld [vmem:[%s172 + $0x4] sm:$0xf]
        %v786 = vld [vmem:[%s172 + $0x8] sm:$0xf]
        %v787 = vld [vmem:[%s172 + $0xc] sm:$0xf]
        %v788 = vld [vmem:[%s172 + $0x10] sm:$0xf]
        %v789 = vld [vmem:[%s172 + $0x14] sm:$0xf]
        %v790 = vld [vmem:[%s172 + $0x18] sm:$0xf]
        %v791 = vld [vmem:[%s172 + $0x1c] sm:$0xf]
        %v792 = vld [vmem:[%s172 + $0x20] sm:$0xf]
        %v793 = vld [vmem:[%s172 + $0x24] sm:$0xf]
        %v794 = vld [vmem:[%s172 + $0x28] sm:$0xf]
        %v795 = vld [vmem:[%s172 + $0x2c] sm:$0xf]
        %v796 = vld [vmem:[%s172 + $0x30] sm:$0xf]
        %v797 = vld [vmem:[%s172 + $0x34] sm:$0xf]
        %v798 = vld [vmem:[%s172 + $0x38] sm:$0xf]
        %v799 = vld [vmem:[%s172 + $0x3c] sm:$0xf]
        %v816 = vunpack.c.l.b16 %v784
        %v817 = vunpack.c.l.b16 %v785
        %v818 = vunpack.c.l.b16 %v786
        %v819 = vunpack.c.l.b16 %v787
        %v820 = vunpack.c.l.b16 %v788
        %v821 = vunpack.c.l.b16 %v789
        %v822 = vunpack.c.l.b16 %v790
        %v823 = vunpack.c.l.b16 %v791
        %v824 = vunpack.c.l.b16 %v792
        %v825 = vunpack.c.l.b16 %v793
        %v826 = vunpack.c.l.b16 %v794
        %v827 = vunpack.c.l.b16 %v795
        %v828 = vunpack.c.l.b16 %v796
        %v829 = vunpack.c.l.b16 %v797
        %v830 = vunpack.c.l.b16 %v798
        %v831 = vunpack.c.l.b16 %v799
        %v832 = vpack.c.b16 %v817, %v816
        %v833 = vpack.c.b16 %v819, %v818
        %v834 = vpack.c.b16 %v821, %v820
        %v835 = vpack.c.b16 %v823, %v822
        %v836 = vpack.c.b16 %v825, %v824
        %v837 = vpack.c.b16 %v827, %v826
        %v838 = vpack.c.b16 %v829, %v828
        %v839 = vpack.c.b16 %v831, %v830
        %848 = vmatprep.subr.bf16.mxu0 0
        %849 = vmatpush1.bf16.msra.mxu0 %v839
        %850 = vmatprep.subr.bf16.mxu0 0
        %851 = vmatpush1.bf16.msra.mxu0 %v838
        %852 = vmatprep.subr.bf16.mxu0 0
        %853 = vmatpush1.bf16.msra.mxu0 %v837
        %854 = vmatprep.subr.bf16.mxu0 0
        %855 = vmatpush1.bf16.msra.mxu0 %v836
        %856 = vmatprep.subr.bf16.mxu0 0
        %857 = vmatpush1.bf16.msra.mxu0 %v835
        %858 = vmatprep.subr.bf16.mxu0 0
        %859 = vmatpush1.bf16.msra.mxu0 %v834
        %860 = vmatprep.subr.bf16.mxu0 0
        %861 = vmatpush1.bf16.msra.mxu0 %v833
        %862 = vmatprep.subr.bf16.mxu0 0
        %863 = vmatpush1.bf16.msra.mxu0 %v832
        %864 = vmatprep.subr.bf16.mxu0 0
        %865 = vmatpush2.bf16.msra.mxu0 0
        %866 = vmatprep.subr.bf16.mxu0 0
        %867 = vmatpush2.bf16.msra.mxu0 0
        %868 = vmatprep.subr.bf16.mxu0 0
        %869 = vmatpush2.bf16.msra.mxu0 0
        %870 = vmatprep.subr.bf16.mxu0 0
        %871 = vmatpush2.bf16.msra.mxu0 0
        %872 = vmatprep.subr.bf16.mxu0 0
        %873 = vmatpush2.bf16.msra.mxu0 0
        %874 = vmatprep.subr.bf16.mxu0 0
        %875 = vmatpush2.bf16.msra.mxu0 0
        %876 = vmatprep.subr.bf16.mxu0 0
        %877 = vmatpush2.bf16.msra.mxu0 0
        %878 = vmatprep.subr.bf16.mxu0 0
        %879 = vmatpush2.bf16.msra.mxu0 0
        %880 = vmatprep.mubr.bf16.mxu0 0
        %881 = vmatmul.mubr.bf16.gmra.mxu0 %v776
        %v882 = vpop.f32.mrf.mxu0
        %v883 = vadd.f32 0.0, %v882
        %v884 = vpop.f32.mrf.mxu0
        %v885 = vpop.f32.mrf.mxu0
        %v886 = vadd.f32 0.0, %v885
        %v887 = vpop.f32.mrf.mxu0
        %888 = vmatprep.mubr.bf16.mxu0 0
        %889 = vmatmul.mubr.bf16.gmra.mxu0 %v777
        %v890 = vpop.f32.mrf.mxu0
        %v891 = vadd.f32 0.0, %v890
        %v892 = vpop.f32.mrf.mxu0
        %v893 = vpop.f32.mrf.mxu0
        %v894 = vadd.f32 0.0, %v893
        %v895 = vpop.f32.mrf.mxu0
        %896 = vmatprep.mubr.bf16.mxu0 0
        %897 = vmatmul.mubr.bf16.gmra.mxu0 %v778
        %v898 = vpop.f32.mrf.mxu0
        %v899 = vadd.f32 0.0, %v898
        %v900 = vpop.f32.mrf.mxu0
        %v901 = vpop.f32.mrf.mxu0
        %v902 = vadd.f32 0.0, %v901
        %v903 = vpop.f32.mrf.mxu0
        %904 = vmatprep.mubr.bf16.mxu0 0
        %905 = vmatmul.mubr.bf16.gmra.mxu0 %v779
        %v906 = vpop.f32.mrf.mxu0
        %v907 = vadd.f32 0.0, %v906
        %v908 = vpop.f32.mrf.mxu0
        %v909 = vpop.f32.mrf.mxu0
        %v910 = vadd.f32 0.0, %v909
        %v911 = vpop.f32.mrf.mxu0
        %912 = vmatprep.mubr.bf16.mxu0 0
        %913 = vmatmul.mubr.bf16.gmra.mxu0 %v780
        %v914 = vpop.f32.mrf.mxu0
        %v915 = vadd.f32 0.0, %v914
        %v916 = vpop.f32.mrf.mxu0
        %v917 = vpop.f32.mrf.mxu0
        %v918 = vadd.f32 0.0, %v917
        %v919 = vpop.f32.mrf.mxu0
        %920 = vmatprep.mubr.bf16.mxu0 0
        %921 = vmatmul.mubr.bf16.gmra.mxu0 %v781
        %v922 = vpop.f32.mrf.mxu0
        %v923 = vadd.f32 0.0, %v922
        %v924 = vpop.f32.mrf.mxu0
        %v925 = vpop.f32.mrf.mxu0
        %v926 = vadd.f32 0.0, %v925
        %v927 = vpop.f32.mrf.mxu0
        %928 = vmatprep.mubr.bf16.mxu0 0
        %929 = vmatmul.mubr.bf16.gmra.mxu0 %v782
        %v930 = vpop.f32.mrf.mxu0
        %v931 = vadd.f32 0.0, %v930
        %v932 = vpop.f32.mrf.mxu0
        %v933 = vpop.f32.mrf.mxu0
        %v934 = vadd.f32 0.0, %v933
        %v935 = vpop.f32.mrf.mxu0
        %936 = vmatprep.mubr.bf16.mxu0 0
        %937 = vmatmul.mubr.bf16.gmra.mxu0 %v783
        %v938 = vpop.f32.mrf.mxu0
        %v939 = vadd.f32 0.0, %v938
        %v940 = vpop.f32.mrf.mxu0
        %v941 = vpop.f32.mrf.mxu0
        %v942 = vadd.f32 0.0, %v941
        %v943 = vpop.f32.mrf.mxu0
        %944 = vdwg.mxu0
        %945 = vst [vmem:[%s177] sm:$0xff] %v883
        %946 = vst [vmem:[%s177 + $0x8] sm:$0xff] %v886
        %947 = vst [vmem:[%s177 + $0x10] sm:$0xff] %v891
        %948 = vst [vmem:[%s177 + $0x18] sm:$0xff] %v894
        %949 = vst [vmem:[%s177 + $0x20] sm:$0xff] %v899
        %950 = vst [vmem:[%s177 + $0x28] sm:$0xff] %v902
        %951 = vst [vmem:[%s177 + $0x30] sm:$0xff] %v907
        %952 = vst [vmem:[%s177 + $0x38] sm:$0xff] %v910
        %953 = vst [vmem:[%s177 + $0x40] sm:$0xff] %v915
        %954 = vst [vmem:[%s177 + $0x48] sm:$0xff] %v918
        %955 = vst [vmem:[%s177 + $0x50] sm:$0xff] %v923
        %956 = vst [vmem:[%s177 + $0x58] sm:$0xff] %v926
        %957 = vst [vmem:[%s177 + $0x60] sm:$0xff] %v931
        %958 = vst [vmem:[%s177 + $0x68] sm:$0xff] %v934
        %959 = vst [vmem:[%s177 + $0x70] sm:$0xff] %v939
        %960 = vst [vmem:[%s177 + $0x78] sm:$0xff] %v942
      $region40: #{forward.1} parent=27 // pred_fallthru
        _
      %s961 = smul.u32 16, %s17
      %p962 = scmp.lt.s32.totalorder %s961, 31
      %s963 = scalar_select %p962, %s961, 31
      %s964 = smul.addr %s963, 8
      %s965 = scalar_lea.vmem %s2, %s964
      // Predicated region
      $region41: #{forward.1} parent=27 // pred_check
        %p966 = pneg %p95
      $region42: #{forward.1} parent=27 // pred_check_branch
        %968 = sbr.rel (%p966) target = $region44
      $region43: #{forward.1} parent=27 // pred_region
        %s969 = smul.u32 16, %s17
      $region44: #{forward.1} parent=27 // pred_fallthru
        _
    $region28: #{forward.1} parent=5 // pred_fallthru
      _
    %p970 = scmp.le.s32.totalorder 2, %s8
    // Predicated region
    $region45: #{forward.1} parent=5 // pred_check
      %p971 = pneg %p970
    $region46: #{forward.1} parent=5 // pred_check_branch
      %973 = sbr.rel (%p971) target = $region48
    $region47: #{forward.1} parent=5 // pred_region
      %s974 = ssub.s32 %s8, 2
      // Predicated region
      $region49: #{forward.1} parent=47 // pred_check
        %p975 = pneg %p101
      $region50: #{forward.1} parent=47 // pred_check_branch
        %977 = sbr.rel (%p975) target = $region52
      $region51: #{forward.1} parent=47 // pred_region
        %s978 = smul.u32 16, %s19
        %p979 = scmp.lt.s32.totalorder %s978, 31
        %s980 = scalar_select %p979, %s978, 31
        %s981 = smul.addr %s980, 8
        %s982 = scalar_lea.vmem %s2, %s981
      $region52: #{forward.1} parent=47 // pred_fallthru
        _
    $region48: #{forward.1} parent=5 // pred_fallthru
      _
  $region6: #{forward.1} parent=0 // loop_footer
    %s12 = sadd.s32 1, %s8
  $region7: #{forward.1} parent=0 // loop_footer_branch
    %7 = sbr.rel target = $region3
  $region8: #{forward.1} parent=0 // loop_exit
    _

</llo_original>
